<compile_context>
chip_gen: v7x
topology: tpu7x:2x2x1
jax: 0.10.0
libtpu: 0.0.40
codegen_flags: <defaults>
</compile_context>

<pallas_src>
import functools

import numpy as np
import jax
import jax.numpy as jnp
from jax.experimental import pallas as pl
from jax.experimental.pallas import tpu as pltpu


def _interp_matrix_np(n_in, n_out):
    """(n_out, n_in) 1-D bilinear interpolation matrix, align_corners=True."""
    m = np.zeros((n_out, n_in), dtype=np.float32)
    if n_in == 1:
        m[:, 0] = 1.0
        return m
    src = np.arange(n_out, dtype=np.float64) * ((n_in - 1) / (n_out - 1))
    i0 = np.clip(np.floor(src).astype(np.int64), 0, n_in - 2)
    frac = (src - i0).astype(np.float32)
    rows = np.arange(n_out)
    m[rows, i0] += 1.0 - frac
    m[rows, i0 + 1] += frac
    return m


@functools.lru_cache(maxsize=None)
def _up2x_weights_np(h, w):
    """Host-cached interpolation matrices: (OH, H) and (W, OW)."""
    mh = _interp_matrix_np(h, 2 * h)              # (OH, H)
    ww = _interp_matrix_np(w, 2 * w).T.copy()     # (W, OW)
    return mh, ww


def _up2x_kernel(x_ref, mh_ref, ww_ref, o_ref):
    bc, h, w = x_ref.shape
    oh = mh_ref.shape[1]
    ow = ww_ref.shape[2]
    # bf16 operands -> bf16 MXU on v6e/v7x (v5e MXU also accepts bf16); f32 acc.
    x_bf = x_ref[...].astype(jnp.bfloat16)                       # (BC, H, W)
    mh = jnp.broadcast_to(mh_ref[...], (bc, oh, h))              # (BC, OH, H)
    ww = jnp.broadcast_to(ww_ref[...], (bc, w, ow))              # (BC, W, OW)
    # Pass 1 (H-interp): t1[b, oh, w] = sum_h mh[oh, h] * x[b, h, w]
    t1 = jnp.einsum("boh,bhw->bow", mh, x_bf,
                    preferred_element_type=jnp.float32)          # (BC, OH, W)
    # Pass 2 (W-interp): out[b, oh, ow] = sum_w t1[b, oh, w] * ww[w, ow]
    out = jnp.einsum("bow,bwq->boq", t1.astype(jnp.bfloat16), ww,
                     preferred_element_type=jnp.float32)         # (BC, OH, OW)
    o_ref[...] = out.astype(o_ref.dtype)


@jax.jit
def bilinear_up2x_pallas(x):
    """F.interpolate(x, scale_factor=2, mode='bilinear', align_corners=True)
    for NCHW input."""
    B, C, H, W = x.shape
    OH, OW = 2 * H, 2 * W
    BC = B * C

    mh_np, ww_np = _up2x_weights_np(H, W)
    # Under jit these become compile-time constants (no per-call upload).
    mh = jnp.asarray(mh_np, dtype=jnp.bfloat16).reshape(1, OH, H)
    ww = jnp.asarray(ww_np, dtype=jnp.bfloat16).reshape(1, W, OW)

    x3 = x.reshape(BC, H, W)   # pure metadata reshape, no copy / no cast

    out3 = pl.pallas_call(
        _up2x_kernel,
        out_shape=jax.ShapeDtypeStruct((BC, OH, OW), x.dtype),
        grid_spec=pltpu.PrefetchScalarGridSpec(
            num_scalar_prefetch=0,
            # Single step: total working set (~100 KiB incl. double-buffering)
            # is far below every generation's scoped-VMEM default.
            grid=(1,),
            in_specs=[
                pl.BlockSpec((BC, H, W), lambda i: (0, 0, 0)),
                pl.BlockSpec((1, OH, H), lambda i: (0, 0, 0)),
                pl.BlockSpec((1, W, OW), lambda i: (0, 0, 0)),
            ],
            out_specs=pl.BlockSpec((BC, OH, OW), lambda i: (0, 0, 0)),
        ),
        compiler_params=pltpu.CompilerParams(
            dimension_semantics=("arbitrary",),
        ),
    )(x3, mh, ww)

    return out3.reshape(B, C, OH, OW)


def bilinear_up2x_ref(x):
    """Independent gather-based reference (align_corners=True), f32 math."""
    B, C, H, W = x.shape
    OH, OW = 2 * H, 2 * W
    sy = jnp.arange(OH, dtype=jnp.float32) * ((H - 1) / (OH - 1))
    sx = jnp.arange(OW, dtype=jnp.float32) * ((W - 1) / (OW - 1))
    y0 = jnp.clip(jnp.floor(sy).astype(jnp.int32), 0, H - 2)
    x0 = jnp.clip(jnp.floor(sx).astype(jnp.int32), 0, W - 2)
    fy = (sy - y0.astype(jnp.float32))[None, None, :, None]
    fx = (sx - x0.astype(jnp.float32))[None, None, None, :]
    top = x[:, :, y0, :] * (1.0 - fy) + x[:, :, y0 + 1, :] * fy
    out = top[:, :, :, x0] * (1.0 - fx) + top[:, :, :, x0 + 1] * fx
    return out.astype(x.dtype)


if __name__ == "__main__":
    key = jax.random.PRNGKey(0)
    B, C, H, W = 2, 4, 16, 16
    x = jax.random.normal(key, (B, C, H, W), dtype=jnp.float32)

    out = jax.block_until_ready(bilinear_up2x_pallas(x))
    ref = bilinear_up2x_ref(x)

    assert out.shape == (B, C, 2 * H, 2 * W), out.shape
    assert out.dtype == x.dtype
    # bf16 operands with f32 accumulation: max abs error is ~1e-2 for
    # unit-scale inputs, comfortably inside the 5e-2 tolerance.
    err = float(jnp.max(jnp.abs(out - ref)))
    assert err < 5e-2, f"max abs error vs reference: {err}"

    print("KERNEL_OK")
</pallas_src>

<mosaic_0001>
module attributes {stable_mosaic.version = 11 : i64} {
  func.func @_up2x_kernel(%arg0: i32, %arg1: memref<8x16x16xf32, #tpu.memory_space<vmem>>, %arg2: memref<1x32x16xbf16, #tpu.memory_space<vmem>>, %arg3: memref<1x16x32xbf16, #tpu.memory_space<vmem>>, %arg4: memref<8x32x32xf32, #tpu.memory_space<vmem>>) attributes {dimension_semantics = [#tpu.dimension_semantics<arbitrary>], iteration_bounds = array<i64: 1>, scalar_prefetch = 0 : i64, scratch_operands = 0 : i64, tpu.core_type = #tpu.core_type<tc>, window_params = [{pipeline_mode = #tpu.pipeline_mode<synchronous>, transform_indices = @transform_0, window_bounds = array<i64: 8, 16, 16>}, {pipeline_mode = #tpu.pipeline_mode<synchronous>, transform_indices = @transform_1, window_bounds = array<i64: 1, 32, 16>}, {pipeline_mode = #tpu.pipeline_mode<synchronous>, transform_indices = @transform_2, window_bounds = array<i64: 1, 16, 32>}, {pipeline_mode = #tpu.pipeline_mode<synchronous>, transform_indices = @transform_3, window_bounds = array<i64: 8, 32, 32>}]} {
    %c0 = arith.constant 0 : index
    %c0_0 = arith.constant 0 : index
    %c0_1 = arith.constant 0 : index
    %0 = vector.load %arg1[%c0, %c0_0, %c0_1] : memref<8x16x16xf32, #tpu.memory_space<vmem>>, vector<8x16x16xf32>
    %1 = arith.truncf %0 : vector<8x16x16xf32> to vector<8x16x16xbf16>
    %c0_2 = arith.constant 0 : index
    %c0_3 = arith.constant 0 : index
    %c0_4 = arith.constant 0 : index
    %2 = vector.load %arg2[%c0_2, %c0_3, %c0_4] : memref<1x32x16xbf16, #tpu.memory_space<vmem>>, vector<1x32x16xbf16>
    %3 = vector.shape_cast %2 : vector<1x32x16xbf16> to vector<1x32x16xbf16>
    %4 = vector.broadcast %3 : vector<1x32x16xbf16> to vector<8x32x16xbf16>
    %c0_5 = arith.constant 0 : index
    %c0_6 = arith.constant 0 : index
    %c0_7 = arith.constant 0 : index
    %5 = vector.load %arg3[%c0_5, %c0_6, %c0_7] : memref<1x16x32xbf16, #tpu.memory_space<vmem>>, vector<1x16x32xbf16>
    %6 = vector.shape_cast %5 : vector<1x16x32xbf16> to vector<1x16x32xbf16>
    %7 = vector.broadcast %6 : vector<1x16x32xbf16> to vector<8x16x32xbf16>
    "tpu.trace_start"() <{level = 10 : i32, message = "boh,bhw->bow"}> : () -> ()
    %cst = arith.constant dense<0.000000e+00> : vector<8x32x16xf32>
    %8 = tpu.matmul %4, %1, %cst {dimension_numbers = #tpu.dot_dimension_numbers<[2], [1], [1], [2], [0, 0, 0, 1, 1, 2], [0], [0]>} : vector<8x32x16xbf16>, vector<8x16x16xbf16>, vector<8x32x16xf32> -> vector<8x32x16xf32>
    "tpu.trace_stop"() : () -> ()
    %9 = arith.truncf %8 : vector<8x32x16xf32> to vector<8x32x16xbf16>
    "tpu.trace_start"() <{level = 10 : i32, message = "bow,bwq->boq"}> : () -> ()
    %cst_8 = arith.constant dense<0.000000e+00> : vector<8x32x32xf32>
    %10 = tpu.matmul %9, %7, %cst_8 {dimension_numbers = #tpu.dot_dimension_numbers<[2], [1], [1], [2], [0, 0, 0, 1, 1, 2], [0], [0]>} : vector<8x32x16xbf16>, vector<8x16x32xbf16>, vector<8x32x32xf32> -> vector<8x32x32xf32>
    "tpu.trace_stop"() : () -> ()
    %c0_9 = arith.constant 0 : index
    %c0_10 = arith.constant 0 : index
    %c0_11 = arith.constant 0 : index
    %11 = vector.load %arg4[%c0_9, %c0_10, %c0_11] : memref<8x32x32xf32, #tpu.memory_space<vmem>>, vector<8x32x32xf32>
    tpu.vector_store %arg4[%c0_9, %c0_10, %c0_11], %10 {strides = array<i32>} : memref<8x32x32xf32, #tpu.memory_space<vmem>>, vector<8x32x32xf32>,
    return
  }
  func.func @transform_0(%arg0: i32) -> (i32, i32, i32) {
    %c0_i32 = arith.constant 0 : i32
    %c0_i32_0 = arith.constant 0 : i32
    %c0_i32_1 = arith.constant 0 : i32
    %c0_i32_2 = arith.constant 0 : i32
    return %c0_i32, %c0_i32_0, %c0_i32_1 : i32, i32, i32
  }
  func.func @transform_1(%arg0: i32) -> (i32, i32, i32) {
    %c0_i32 = arith.constant 0 : i32
    %c0_i32_0 = arith.constant 0 : i32
    %c0_i32_1 = arith.constant 0 : i32
    %c0_i32_2 = arith.constant 0 : i32
    return %c0_i32, %c0_i32_0, %c0_i32_1 : i32, i32, i32
  }
  func.func @transform_2(%arg0: i32) -> (i32, i32, i32) {
    %c0_i32 = arith.constant 0 : i32
    %c0_i32_0 = arith.constant 0 : i32
    %c0_i32_1 = arith.constant 0 : i32
    %c0_i32_2 = arith.constant 0 : i32
    return %c0_i32, %c0_i32_0, %c0_i32_1 : i32, i32, i32
  }
  func.func @transform_3(%arg0: i32) -> (i32, i32, i32) {
    %c0_i32 = arith.constant 0 : i32
    %c0_i32_0 = arith.constant 0 : i32
    %c0_i32_1 = arith.constant 0 : i32
    %c0_i32_2 = arith.constant 0 : i32
    return %c0_i32, %c0_i32_0, %c0_i32_1 : i32, i32, i32
  }
}

</mosaic_0001>

<llo_original>
// kernel: bilinear_up2x_pallas.1
$region0: #{bilinear_up2x_pallas.1}
  #allocation0 [shape = 'u32[]', space=smem, size = 0x4, offset = 0x4, fixed_abs, tag = 'smem constant byte address 0x4 - core index']
  #allocation1 [shape = 'u32[144,128]{1,0:T(1,128)}', space=vmem, size = 0x12000, scoped, tag = 'internal scratch']
  %s0 = inlined_call_operand.hbm [shape: f32[8,16,16], index: 0, kind: input, shape index: {}]
  %s1 = inlined_call_operand.hbm [shape: bf16[1,32,16], index: 1, kind: input, shape index: {}]
  %s2 = inlined_call_operand.vmem [shape: bf16[1,16,32], index: 2, kind: input, shape index: {}]
  %s3 = inlined_call_operand.hbm [shape: f32[8,32,32], index: 3, kind: output, shape index: {}]
  %s4 = sld [smem:[#allocation0]]
  $region30: #{bilinear_up2x_pallas.1} parent=0
    _
  %s6 = ssub.s32 1, %s4
  %s7 = scalar_select 0, %s6, %s4
  $region1: #{bilinear_up2x_pallas.1} parent=0
    #allocation2 [shape = 'u8[65536]{0}', space=vmem, size = 0x10000, scoped, tag = 'input window, operand 0, single buffered']
    #allocation3 [shape = 's32[1]{0}', space=sflag, size = 0x4, scoped, tag = 'scoped memory for bilinear_up2x_pallas.1']
    #allocation4 [shape = 's32[1]{0}', space=sflag, size = 0x4, scoped, tag = 'scoped memory for bilinear_up2x_pallas.1']
    #allocation5 [shape = 'u8[8192]{0}', space=vmem, size = 0x2000, scoped, tag = 'input window, operand 1, single buffered']
    #allocation6 [shape = 's32[1]{0}', space=sflag, size = 0x4, scoped, tag = 'scoped memory for bilinear_up2x_pallas.1']
    #allocation7 [shape = 'u8[131072]{0}', space=vmem, size = 0x20000, scoped, tag = 'output window, operand 0, single buffered']
    %8 = vsyncpa [#allocation3], 0
    %9 = vsyncpa [#allocation6], 0
    %10 = vsyncpa [#allocation4], 0
    // Predicated region
    $region2: #{bilinear_up2x_pallas.1} parent=1 // pred_check
      _
    $region3: #{bilinear_up2x_pallas.1} parent=1 // pred_check_branch
      %12 = sbr.rel (0) target = $region5
    $region4: #{bilinear_up2x_pallas.1} parent=1 // pred_region
      %s14 = ssub.s32 2048, 2048
      %15 = vsyncadd [#allocation3], %s14
      %s16 = sshll.u32 [#allocation2], 4
      %s17 = int_to_ptr.vmem [resolvable:$true] %s16
      %22 = dma.hbm_to_vmem [thread:$0]  %s0, 2048, %s17, [#allocation3], 128, 128, 8
    $region5: #{bilinear_up2x_pallas.1} parent=1 // pred_fallthru
      _
    // Predicated region
    $region6: #{bilinear_up2x_pallas.1} parent=1 // pred_check
      _
    $region7: #{bilinear_up2x_pallas.1} parent=1 // pred_check_branch
      %24 = sbr.rel (0) target = $region9
    $region8: #{bilinear_up2x_pallas.1} parent=1 // pred_region
      %s26 = ssub.s32 256, 256
      %27 = vsyncadd [#allocation6], %s26
      %s28 = sshll.u32 [#allocation5], 4
      %s29 = int_to_ptr.vmem [resolvable:$true] %s28
      %34 = dma.hbm_to_vmem [thread:$0]  %s1, 256, %s29, [#allocation6], 64, 64, 4
    $region9: #{bilinear_up2x_pallas.1} parent=1 // pred_fallthru
      _
    // Predicated region
    $region10: #{bilinear_up2x_pallas.1} parent=1 // pred_check
      _
    $region11: #{bilinear_up2x_pallas.1} parent=1 // pred_check_branch
      %36 = sbr.rel (0) target = $region13
    $region12: #{bilinear_up2x_pallas.1} parent=1 // pred_region
      _
    $region13: #{bilinear_up2x_pallas.1} parent=1 // pred_fallthru
      _
    // Predicated region
    $region14: #{bilinear_up2x_pallas.1} parent=1 // pred_check
      _
    $region15: #{bilinear_up2x_pallas.1} parent=1 // pred_check_branch
      %38 = sbr.rel (0) target = $region17
    $region16: #{bilinear_up2x_pallas.1} parent=1 // pred_region
      %39 = dma.done [#allocation3], 2048
    $region17: #{bilinear_up2x_pallas.1} parent=1 // pred_fallthru
      _
    // Predicated region
    $region18: #{bilinear_up2x_pallas.1} parent=1 // pred_check
      _
    $region19: #{bilinear_up2x_pallas.1} parent=1 // pred_check_branch
      %41 = sbr.rel (0) target = $region21
    $region20: #{bilinear_up2x_pallas.1} parent=1 // pred_region
      %42 = dma.done [#allocation6], 256
    $region21: #{bilinear_up2x_pallas.1} parent=1 // pred_fallthru
      _
    %v44 = vld [vmem:[#allocation2] sm:$0xff]
    %v45 = vld [vmem:[#allocation2 + $0x8] sm:$0xff]
    %v46 = vld [vmem:[#allocation2 + $0x10] sm:$0xff]
    %v47 = vld [vmem:[#allocation2 + $0x18] sm:$0xff]
    %v48 = vld [vmem:[#allocation2 + $0x20] sm:$0xff]
    %v49 = vld [vmem:[#allocation2 + $0x28] sm:$0xff]
    %v50 = vld [vmem:[#allocation2 + $0x30] sm:$0xff]
    %v51 = vld [vmem:[#allocation2 + $0x38] sm:$0xff]
    %v52 = vld [vmem:[#allocation2 + $0x40] sm:$0xff]
    %v53 = vld [vmem:[#allocation2 + $0x48] sm:$0xff]
    %v54 = vld [vmem:[#allocation2 + $0x50] sm:$0xff]
    %v55 = vld [vmem:[#allocation2 + $0x58] sm:$0xff]
    %v56 = vld [vmem:[#allocation2 + $0x60] sm:$0xff]
    %v57 = vld [vmem:[#allocation2 + $0x68] sm:$0xff]
    %v58 = vld [vmem:[#allocation2 + $0x70] sm:$0xff]
    %v59 = vld [vmem:[#allocation2 + $0x78] sm:$0xff]
    %v60 = vpack.c.bf16 %v45, %v44
    %v61 = vpack.c.bf16 %v47, %v46
    %v62 = vpack.c.bf16 %v49, %v48
    %v63 = vpack.c.bf16 %v51, %v50
    %v64 = vpack.c.bf16 %v53, %v52
    %v65 = vpack.c.bf16 %v55, %v54
    %v66 = vpack.c.bf16 %v57, %v56
    %v67 = vpack.c.bf16 %v59, %v58
    %v68 = vld [vmem:[#allocation5] sm:$0xf]
    %v69 = vld [vmem:[#allocation5 + $0x4] sm:$0xf]
    %v70 = vld [vmem:[#allocation5 + $0x8] sm:$0xf]
    %v71 = vld [vmem:[#allocation5 + $0xc] sm:$0xf]
    %v72 = vld [vmem:[%s2] sm:$0xf]
    %v73 = vld [vmem:[%s2 + $0x4] sm:$0xf]
    %v78 = vunpack.c.l.b16 %v68
    %v79 = vunpack.c.l.b16 %v69
    %v80 = vunpack.c.l.b16 %v70
    %v81 = vunpack.c.l.b16 %v71
    %v82 = vpack.c.b16 %v79, %v78
    %v83 = vpack.c.b16 %v81, %v80
    %vm84 = vcmask 130048
    %v86 = vsel %vm84, %v82, 0
    %v89 = vsel %vm84, %v83, 0
    %91 = vmatprep.subr.bf16.mxu0 0
    %92 = vmatpush1.bf16.msra.mxu0 %v60
    %93 = vmatprep.subr.bf16.mxu0 0
    %94 = vmatpush1.bf16.msra.mxu0 0
    %95 = vmatprep.subr.bf16.mxu0 0
    %96 = vmatpush1.bf16.msra.mxu0 0
    %97 = vmatprep.subr.bf16.mxu0 0
    %98 = vmatpush1.bf16.msra.mxu0 0
    %99 = vmatprep.subr.bf16.mxu0 0
    %100 = vmatpush1.bf16.msra.mxu0 0
    %101 = vmatprep.subr.bf16.mxu0 0
    %102 = vmatpush1.bf16.msra.mxu0 0
    %103 = vmatprep.subr.bf16.mxu0 0
    %104 = vmatpush1.bf16.msra.mxu0 0
    %105 = vmatprep.subr.bf16.mxu0 0
    %106 = vmatpush1.bf16.msra.mxu0 0
    %107 = vmatprep.subr.bf16.mxu0 0
    %108 = vmatpush1.bf16.msra.mxu0 0
    %109 = vmatprep.subr.bf16.mxu0 0
    %110 = vmatpush1.bf16.msra.mxu0 0
    %111 = vmatprep.subr.bf16.mxu0 0
    %112 = vmatpush1.bf16.msra.mxu0 0
    %113 = vmatprep.subr.bf16.mxu0 0
    %114 = vmatpush1.bf16.msra.mxu0 0
    %115 = vmatprep.subr.bf16.mxu0 0
    %116 = vmatpush1.bf16.msra.mxu0 0
    %117 = vmatprep.subr.bf16.mxu0 0
    %118 = vmatpush1.bf16.msra.mxu0 0
    %119 = vmatprep.subr.bf16.mxu0 0
    %120 = vmatpush1.bf16.msra.mxu0 0
    %121 = vmatprep.subr.bf16.mxu0 0
    %122 = vmatpush1.bf16.msra.mxu0 0
    %123 = vmatprep.mubr.bf16.mxu0 0
    %124 = vmatmul.mubr.bf16.gmra.mrb[0].mxu0 %v86
    %v125 = vpop.f32.mrb[0].mxu0
    %v126 = vadd.f32 0.0, %v125
    %v127 = vpop.f32.mrb[0].mxu0
    %v128 = vpop.f32.mrb[0].mxu0
    %v129 = vadd.f32 0.0, %v128
    %v130 = vpop.f32.mrb[0].mxu0
    %131 = vmatprep.mubr.bf16.mxu0 0
    %132 = vmatmul.mubr.bf16.gmra.mrb[0].mxu0 %v89
    %v133 = vpop.f32.mrb[0].mxu0
    %v134 = vadd.f32 0.0, %v133
    %v135 = vpop.f32.mrb[0].mxu0
    %v136 = vpop.f32.mrb[0].mxu0
    %v137 = vadd.f32 0.0, %v136
    %v138 = vpop.f32.mrb[0].mxu0
    %139 = vdwg.mxu0
    %140 = vmatprep.subr.bf16.mxu0 0
    %141 = vmatpush1.bf16.msra.mxu0 %v61
    %142 = vmatprep.subr.bf16.mxu0 0
    %143 = vmatpush1.bf16.msra.mxu0 0
    %144 = vmatprep.subr.bf16.mxu0 0
    %145 = vmatpush1.bf16.msra.mxu0 0
    %146 = vmatprep.subr.bf16.mxu0 0
    %147 = vmatpush1.bf16.msra.mxu0 0
    %148 = vmatprep.subr.bf16.mxu0 0
    %149 = vmatpush1.bf16.msra.mxu0 0
    %150 = vmatprep.subr.bf16.mxu0 0
    %151 = vmatpush1.bf16.msra.mxu0 0
    %152 = vmatprep.subr.bf16.mxu0 0
    %153 = vmatpush1.bf16.msra.mxu0 0
    %154 = vmatprep.subr.bf16.mxu0 0
    %155 = vmatpush1.bf16.msra.mxu0 0
    %156 = vmatprep.subr.bf16.mxu0 0
    %157 = vmatpush1.bf16.msra.mxu0 0
    %158 = vmatprep.subr.bf16.mxu0 0
    %159 = vmatpush1.bf16.msra.mxu0 0
    %160 = vmatprep.subr.bf16.mxu0 0
    %161 = vmatpush1.bf16.msra.mxu0 0
    %162 = vmatprep.subr.bf16.mxu0 0
    %163 = vmatpush1.bf16.msra.mxu0 0
    %164 = vmatprep.subr.bf16.mxu0 0
    %165 = vmatpush1.bf16.msra.mxu0 0
    %166 = vmatprep.subr.bf16.mxu0 0
    %167 = vmatpush1.bf16.msra.mxu0 0
    %168 = vmatprep.subr.bf16.mxu0 0
    %169 = vmatpush1.bf16.msra.mxu0 0
    %170 = vmatprep.subr.bf16.mxu0 0
    %171 = vmatpush1.bf16.msra.mxu0 0
    %172 = vmatprep.mubr.bf16.mxu0 0
    %173 = vmatmul.mubr.bf16.gmra.mrb[0].mxu0 %v86
    %v174 = vpop.f32.mrb[0].mxu0
    %v175 = vadd.f32 0.0, %v174
    %v176 = vpop.f32.mrb[0].mxu0
    %v177 = vpop.f32.mrb[0].mxu0
    %v178 = vadd.f32 0.0, %v177
    %v179 = vpop.f32.mrb[0].mxu0
    %180 = vmatprep.mubr.bf16.mxu0 0
    %181 = vmatmul.mubr.bf16.gmra.mrb[0].mxu0 %v89
    %v182 = vpop.f32.mrb[0].mxu0
    %v183 = vadd.f32 0.0, %v182
    %v184 = vpop.f32.mrb[0].mxu0
    %v185 = vpop.f32.mrb[0].mxu0
    %v186 = vadd.f32 0.0, %v185
    %v187 = vpop.f32.mrb[0].mxu0
    %188 = vdwg.mxu0
    %189 = vmatprep.subr.bf16.mxu0 0
    %190 = vmatpush1.bf16.msra.mxu0 %v62
    %191 = vmatprep.subr.bf16.mxu0 0
    %192 = vmatpush1.bf16.msra.mxu0 0
    %193 = vmatprep.subr.bf16.mxu0 0
    %194 = vmatpush1.bf16.msra.mxu0 0
    %195 = vmatprep.subr.bf16.mxu0 0
    %196 = vmatpush1.bf16.msra.mxu0 0
    %197 = vmatprep.subr.bf16.mxu0 0
    %198 = vmatpush1.bf16.msra.mxu0 0
    %199 = vmatprep.subr.bf16.mxu0 0
    %200 = vmatpush1.bf16.msra.mxu0 0
    %201 = vmatprep.subr.bf16.mxu0 0
    %202 = vmatpush1.bf16.msra.mxu0 0
    %203 = vmatprep.subr.bf16.mxu0 0
    %204 = vmatpush1.bf16.msra.mxu0 0
    %205 = vmatprep.subr.bf16.mxu0 0
    %206 = vmatpush1.bf16.msra.mxu0 0
    %207 = vmatprep.subr.bf16.mxu0 0
    %208 = vmatpush1.bf16.msra.mxu0 0
    %209 = vmatprep.subr.bf16.mxu0 0
    %210 = vmatpush1.bf16.msra.mxu0 0
    %211 = vmatprep.subr.bf16.mxu0 0
    %212 = vmatpush1.bf16.msra.mxu0 0
    %213 = vmatprep.subr.bf16.mxu0 0
    %214 = vmatpush1.bf16.msra.mxu0 0
    %215 = vmatprep.subr.bf16.mxu0 0
    %216 = vmatpush1.bf16.msra.mxu0 0
    %217 = vmatprep.subr.bf16.mxu0 0
    %218 = vmatpush1.bf16.msra.mxu0 0
    %219 = vmatprep.subr.bf16.mxu0 0
    %220 = vmatpush1.bf16.msra.mxu0 0
    %221 = vmatprep.mubr.bf16.mxu0 0
    %222 = vmatmul.mubr.bf16.gmra.mrb[0].mxu0 %v86
    %v223 = vpop.f32.mrb[0].mxu0
    %v224 = vadd.f32 0.0, %v223
    %v225 = vpop.f32.mrb[0].mxu0
    %v226 = vpop.f32.mrb[0].mxu0
    %v227 = vadd.f32 0.0, %v226
    %v228 = vpop.f32.mrb[0].mxu0
    %229 = vmatprep.mubr.bf16.mxu0 0
    %230 = vmatmul.mubr.bf16.gmra.mrb[0].mxu0 %v89
    %v231 = vpop.f32.mrb[0].mxu0
    %v232 = vadd.f32 0.0, %v231
    %v233 = vpop.f32.mrb[0].mxu0
    %v234 = vpop.f32.mrb[0].mxu0
    %v235 = vadd.f32 0.0, %v234
    %v236 = vpop.f32.mrb[0].mxu0
    %237 = vdwg.mxu0
    %238 = vmatprep.subr.bf16.mxu0 0
    %239 = vmatpush1.bf16.msra.mxu0 %v63
    %240 = vmatprep.subr.bf16.mxu0 0
    %241 = vmatpush1.bf16.msra.mxu0 0
    %242 = vmatprep.subr.bf16.mxu0 0
    %243 = vmatpush1.bf16.msra.mxu0 0
    %244 = vmatprep.subr.bf16.mxu0 0
    %245 = vmatpush1.bf16.msra.mxu0 0
    %246 = vmatprep.subr.bf16.mxu0 0
    %247 = vmatpush1.bf16.msra.mxu0 0
    %248 = vmatprep.subr.bf16.mxu0 0
    %249 = vmatpush1.bf16.msra.mxu0 0
    %250 = vmatprep.subr.bf16.mxu0 0
    %251 = vmatpush1.bf16.msra.mxu0 0
    %252 = vmatprep.subr.bf16.mxu0 0
    %253 = vmatpush1.bf16.msra.mxu0 0
    %254 = vmatprep.subr.bf16.mxu0 0
    %255 = vmatpush1.bf16.msra.mxu0 0
    %256 = vmatprep.subr.bf16.mxu0 0
    %257 = vmatpush1.bf16.msra.mxu0 0
    %258 = vmatprep.subr.bf16.mxu0 0
    %259 = vmatpush1.bf16.msra.mxu0 0
    %260 = vmatprep.subr.bf16.mxu0 0
    %261 = vmatpush1.bf16.msra.mxu0 0
    %262 = vmatprep.subr.bf16.mxu0 0
    %263 = vmatpush1.bf16.msra.mxu0 0
    %264 = vmatprep.subr.bf16.mxu0 0
    %265 = vmatpush1.bf16.msra.mxu0 0
    %266 = vmatprep.subr.bf16.mxu0 0
    %267 = vmatpush1.bf16.msra.mxu0 0
    %268 = vmatprep.subr.bf16.mxu0 0
    %269 = vmatpush1.bf16.msra.mxu0 0
    %270 = vmatprep.mubr.bf16.mxu0 0
    %271 = vmatmul.mubr.bf16.gmra.mrb[0].mxu0 %v86
    %v272 = vpop.f32.mrb[0].mxu0
    %v273 = vadd.f32 0.0, %v272
    %v274 = vpop.f32.mrb[0].mxu0
    %v275 = vpop.f32.mrb[0].mxu0
    %v276 = vadd.f32 0.0, %v275
    %v277 = vpop.f32.mrb[0].mxu0
    %278 = vmatprep.mubr.bf16.mxu0 0
    %279 = vmatmul.mubr.bf16.gmra.mrb[0].mxu0 %v89
    %v280 = vpop.f32.mrb[0].mxu0
    %v281 = vadd.f32 0.0, %v280
    %v282 = vpop.f32.mrb[0].mxu0
    %v283 = vpop.f32.mrb[0].mxu0
    %v284 = vadd.f32 0.0, %v283
    %v285 = vpop.f32.mrb[0].mxu0
    %286 = vdwg.mxu0
    %287 = vmatprep.subr.bf16.mxu0 0
    %288 = vmatpush1.bf16.msra.mxu0 %v64
    %289 = vmatprep.subr.bf16.mxu0 0
    %290 = vmatpush1.bf16.msra.mxu0 0
    %291 = vmatprep.subr.bf16.mxu0 0
    %292 = vmatpush1.bf16.msra.mxu0 0
    %293 = vmatprep.subr.bf16.mxu0 0
    %294 = vmatpush1.bf16.msra.mxu0 0
    %295 = vmatprep.subr.bf16.mxu0 0
    %296 = vmatpush1.bf16.msra.mxu0 0
    %297 = vmatprep.subr.bf16.mxu0 0
    %298 = vmatpush1.bf16.msra.mxu0 0
    %299 = vmatprep.subr.bf16.mxu0 0
    %300 = vmatpush1.bf16.msra.mxu0 0
    %301 = vmatprep.subr.bf16.mxu0 0
    %302 = vmatpush1.bf16.msra.mxu0 0
    %303 = vmatprep.subr.bf16.mxu0 0
    %304 = vmatpush1.bf16.msra.mxu0 0
    %305 = vmatprep.subr.bf16.mxu0 0
    %306 = vmatpush1.bf16.msra.mxu0 0
    %307 = vmatprep.subr.bf16.mxu0 0
    %308 = vmatpush1.bf16.msra.mxu0 0
    %309 = vmatprep.subr.bf16.mxu0 0
    %310 = vmatpush1.bf16.msra.mxu0 0
    %311 = vmatprep.subr.bf16.mxu0 0
    %312 = vmatpush1.bf16.msra.mxu0 0
    %313 = vmatprep.subr.bf16.mxu0 0
    %314 = vmatpush1.bf16.msra.mxu0 0
    %315 = vmatprep.subr.bf16.mxu0 0
    %316 = vmatpush1.bf16.msra.mxu0 0
    %317 = vmatprep.subr.bf16.mxu0 0
    %318 = vmatpush1.bf16.msra.mxu0 0
    %319 = vmatprep.mubr.bf16.mxu0 0
    %320 = vmatmul.mubr.bf16.gmra.mrb[0].mxu0 %v86
    %v321 = vpop.f32.mrb[0].mxu0
    %v322 = vadd.f32 0.0, %v321
    %v323 = vpop.f32.mrb[0].mxu0
    %v324 = vpop.f32.mrb[0].mxu0
    %v325 = vadd.f32 0.0, %v324
    %v326 = vpop.f32.mrb[0].mxu0
    %327 = vmatprep.mubr.bf16.mxu0 0
    %328 = vmatmul.mubr.bf16.gmra.mrb[0].mxu0 %v89
    %v329 = vpop.f32.mrb[0].mxu0
    %v330 = vadd.f32 0.0, %v329
    %v331 = vpop.f32.mrb[0].mxu0
    %v332 = vpop.f32.mrb[0].mxu0
    %v333 = vadd.f32 0.0, %v332
    %v334 = vpop.f32.mrb[0].mxu0
    %335 = vdwg.mxu0
    %336 = vmatprep.subr.bf16.mxu0 0
    %337 = vmatpush1.bf16.msra.mxu0 %v65
    %338 = vmatprep.subr.bf16.mxu0 0
    %339 = vmatpush1.bf16.msra.mxu0 0
    %340 = vmatprep.subr.bf16.mxu0 0
    %341 = vmatpush1.bf16.msra.mxu0 0
    %342 = vmatprep.subr.bf16.mxu0 0
    %343 = vmatpush1.bf16.msra.mxu0 0
    %344 = vmatprep.subr.bf16.mxu0 0
    %345 = vmatpush1.bf16.msra.mxu0 0
    %346 = vmatprep.subr.bf16.mxu0 0
    %347 = vmatpush1.bf16.msra.mxu0 0
    %348 = vmatprep.subr.bf16.mxu0 0
    %349 = vmatpush1.bf16.msra.mxu0 0
    %350 = vmatprep.subr.bf16.mxu0 0
    %351 = vmatpush1.bf16.msra.mxu0 0
    %352 = vmatprep.subr.bf16.mxu0 0
    %353 = vmatpush1.bf16.msra.mxu0 0
    %354 = vmatprep.subr.bf16.mxu0 0
    %355 = vmatpush1.bf16.msra.mxu0 0
    %356 = vmatprep.subr.bf16.mxu0 0
    %357 = vmatpush1.bf16.msra.mxu0 0
    %358 = vmatprep.subr.bf16.mxu0 0
    %359 = vmatpush1.bf16.msra.mxu0 0
    %360 = vmatprep.subr.bf16.mxu0 0
    %361 = vmatpush1.bf16.msra.mxu0 0
    %362 = vmatprep.subr.bf16.mxu0 0
    %363 = vmatpush1.bf16.msra.mxu0 0
    %364 = vmatprep.subr.bf16.mxu0 0
    %365 = vmatpush1.bf16.msra.mxu0 0
    %366 = vmatprep.subr.bf16.mxu0 0
    %367 = vmatpush1.bf16.msra.mxu0 0
    %368 = vmatprep.mubr.bf16.mxu0 0
    %369 = vmatmul.mubr.bf16.gmra.mrb[0].mxu0 %v86
    %v370 = vpop.f32.mrb[0].mxu0
    %v371 = vadd.f32 0.0, %v370
    %v372 = vpop.f32.mrb[0].mxu0
    %v373 = vpop.f32.mrb[0].mxu0
    %v374 = vadd.f32 0.0, %v373
    %v375 = vpop.f32.mrb[0].mxu0
    %376 = vmatprep.mubr.bf16.mxu0 0
    %377 = vmatmul.mubr.bf16.gmra.mrb[0].mxu0 %v89
    %v378 = vpop.f32.mrb[0].mxu0
    %v379 = vadd.f32 0.0, %v378
    %v380 = vpop.f32.mrb[0].mxu0
    %v381 = vpop.f32.mrb[0].mxu0
    %v382 = vadd.f32 0.0, %v381
    %v383 = vpop.f32.mrb[0].mxu0
    %384 = vdwg.mxu0
    %385 = vmatprep.subr.bf16.mxu0 0
    %386 = vmatpush1.bf16.msra.mxu0 %v66
    %387 = vmatprep.subr.bf16.mxu0 0
    %388 = vmatpush1.bf16.msra.mxu0 0
    %389 = vmatprep.subr.bf16.mxu0 0
    %390 = vmatpush1.bf16.msra.mxu0 0
    %391 = vmatprep.subr.bf16.mxu0 0
    %392 = vmatpush1.bf16.msra.mxu0 0
    %393 = vmatprep.subr.bf16.mxu0 0
    %394 = vmatpush1.bf16.msra.mxu0 0
    %395 = vmatprep.subr.bf16.mxu0 0
    %396 = vmatpush1.bf16.msra.mxu0 0
    %397 = vmatprep.subr.bf16.mxu0 0
    %398 = vmatpush1.bf16.msra.mxu0 0
    %399 = vmatprep.subr.bf16.mxu0 0
    %400 = vmatpush1.bf16.msra.mxu0 0
    %401 = vmatprep.subr.bf16.mxu0 0
    %402 = vmatpush1.bf16.msra.mxu0 0
    %403 = vmatprep.subr.bf16.mxu0 0
    %404 = vmatpush1.bf16.msra.mxu0 0
    %405 = vmatprep.subr.bf16.mxu0 0
    %406 = vmatpush1.bf16.msra.mxu0 0
    %407 = vmatprep.subr.bf16.mxu0 0
    %408 = vmatpush1.bf16.msra.mxu0 0
    %409 = vmatprep.subr.bf16.mxu0 0
    %410 = vmatpush1.bf16.msra.mxu0 0
    %411 = vmatprep.subr.bf16.mxu0 0
    %412 = vmatpush1.bf16.msra.mxu0 0
    %413 = vmatprep.subr.bf16.mxu0 0
    %414 = vmatpush1.bf16.msra.mxu0 0
    %415 = vmatprep.subr.bf16.mxu0 0
    %416 = vmatpush1.bf16.msra.mxu0 0
    %417 = vmatprep.mubr.bf16.mxu0 0
    %418 = vmatmul.mubr.bf16.gmra.mrb[0].mxu0 %v86
    %v419 = vpop.f32.mrb[0].mxu0
    %v420 = vadd.f32 0.0, %v419
    %v421 = vpop.f32.mrb[0].mxu0
    %v422 = vpop.f32.mrb[0].mxu0
    %v423 = vadd.f32 0.0, %v422
    %v424 = vpop.f32.mrb[0].mxu0
    %425 = vmatprep.mubr.bf16.mxu0 0
    %426 = vmatmul.mubr.bf16.gmra.mrb[0].mxu0 %v89
    %v427 = vpop.f32.mrb[0].mxu0
    %v428 = vadd.f32 0.0, %v427
    %v429 = vpop.f32.mrb[0].mxu0
    %v430 = vpop.f32.mrb[0].mxu0
    %v431 = vadd.f32 0.0, %v430
    %v432 = vpop.f32.mrb[0].mxu0
    %433 = vdwg.mxu0
    %434 = vmatprep.subr.bf16.mxu0 0
    %435 = vmatpush1.bf16.msra.mxu0 %v67
    %436 = vmatprep.subr.bf16.mxu0 0
    %437 = vmatpush1.bf16.msra.mxu0 0
    %438 = vmatprep.subr.bf16.mxu0 0
    %439 = vmatpush1.bf16.msra.mxu0 0
    %440 = vmatprep.subr.bf16.mxu0 0
    %441 = vmatpush1.bf16.msra.mxu0 0
    %442 = vmatprep.subr.bf16.mxu0 0
    %443 = vmatpush1.bf16.msra.mxu0 0
    %444 = vmatprep.subr.bf16.mxu0 0
    %445 = vmatpush1.bf16.msra.mxu0 0
    %446 = vmatprep.subr.bf16.mxu0 0
    %447 = vmatpush1.bf16.msra.mxu0 0
    %448 = vmatprep.subr.bf16.mxu0 0
    %449 = vmatpush1.bf16.msra.mxu0 0
    %450 = vmatprep.subr.bf16.mxu0 0
    %451 = vmatpush1.bf16.msra.mxu0 0
    %452 = vmatprep.subr.bf16.mxu0 0
    %453 = vmatpush1.bf16.msra.mxu0 0
    %454 = vmatprep.subr.bf16.mxu0 0
    %455 = vmatpush1.bf16.msra.mxu0 0
    %456 = vmatprep.subr.bf16.mxu0 0
    %457 = vmatpush1.bf16.msra.mxu0 0
    %458 = vmatprep.subr.bf16.mxu0 0
    %459 = vmatpush1.bf16.msra.mxu0 0
    %460 = vmatprep.subr.bf16.mxu0 0
    %461 = vmatpush1.bf16.msra.mxu0 0
    %462 = vmatprep.subr.bf16.mxu0 0
    %463 = vmatpush1.bf16.msra.mxu0 0
    %464 = vmatprep.subr.bf16.mxu0 0
    %465 = vmatpush1.bf16.msra.mxu0 0
    %466 = vmatprep.mubr.bf16.mxu0 0
    %467 = vmatmul.mubr.bf16.gmra.mrb[0].mxu0 %v86
    %v468 = vpop.f32.mrb[0].mxu0
    %v469 = vadd.f32 0.0, %v468
    %v470 = vpop.f32.mrb[0].mxu0
    %v471 = vpop.f32.mrb[0].mxu0
    %v472 = vadd.f32 0.0, %v471
    %v473 = vpop.f32.mrb[0].mxu0
    %474 = vmatprep.mubr.bf16.mxu0 0
    %475 = vmatmul.mubr.bf16.gmra.mrb[0].mxu0 %v89
    %v476 = vpop.f32.mrb[0].mxu0
    %v477 = vadd.f32 0.0, %v476
    %v478 = vpop.f32.mrb[0].mxu0
    %v479 = vpop.f32.mrb[0].mxu0
    %v480 = vadd.f32 0.0, %v479
    %v481 = vpop.f32.mrb[0].mxu0
    %482 = vdwg.mxu0
    %v483 = vpack.c.bf16 %v129, %v126
    %v484 = vpack.c.bf16 %v137, %v134
    %v485 = vpack.c.bf16 %v178, %v175
    %v486 = vpack.c.bf16 %v186, %v183
    %v487 = vpack.c.bf16 %v227, %v224
    %v488 = vpack.c.bf16 %v235, %v232
    %v489 = vpack.c.bf16 %v276, %v273
    %v490 = vpack.c.bf16 %v284, %v281
    %v491 = vpack.c.bf16 %v325, %v322
    %v492 = vpack.c.bf16 %v333, %v330
    %v493 = vpack.c.bf16 %v374, %v371
    %v494 = vpack.c.bf16 %v382, %v379
    %v495 = vpack.c.bf16 %v423, %v420
    %v496 = vpack.c.bf16 %v431, %v428
    %v497 = vpack.c.bf16 %v472, %v469
    %v498 = vpack.c.bf16 %v480, %v477
    %v501 = vunpack.c.l.b16 %v72
    %v502 = vunpack.c.l.b16 %v73
    %v503 = vpack.c.b16 %v502, %v501
    %v506 = vsel %vm84, %v483, 0
    %v509 = vsel %vm84, %v484, 0
    %511 = vmatprep.subr.bf16.mxu0 0
    %512 = vmatpush1.bf16.msra.mxu0 %v503
    %513 = vmatprep.subr.bf16.mxu0 0
    %514 = vmatpush1.bf16.msra.mxu0 0
    %515 = vmatprep.subr.bf16.mxu0 0
    %516 = vmatpush1.bf16.msra.mxu0 0
    %517 = vmatprep.subr.bf16.mxu0 0
    %518 = vmatpush1.bf16.msra.mxu0 0
    %519 = vmatprep.subr.bf16.mxu0 0
    %520 = vmatpush1.bf16.msra.mxu0 0
    %521 = vmatprep.subr.bf16.mxu0 0
    %522 = vmatpush1.bf16.msra.mxu0 0
    %523 = vmatprep.subr.bf16.mxu0 0
    %524 = vmatpush1.bf16.msra.mxu0 0
    %525 = vmatprep.subr.bf16.mxu0 0
    %526 = vmatpush1.bf16.msra.mxu0 0
    %527 = vmatprep.subr.bf16.mxu0 0
    %528 = vmatpush1.bf16.msra.mxu0 0
    %529 = vmatprep.subr.bf16.mxu0 0
    %530 = vmatpush1.bf16.msra.mxu0 0
    %531 = vmatprep.subr.bf16.mxu0 0
    %532 = vmatpush1.bf16.msra.mxu0 0
    %533 = vmatprep.subr.bf16.mxu0 0
    %534 = vmatpush1.bf16.msra.mxu0 0
    %535 = vmatprep.subr.bf16.mxu0 0
    %536 = vmatpush1.bf16.msra.mxu0 0
    %537 = vmatprep.subr.bf16.mxu0 0
    %538 = vmatpush1.bf16.msra.mxu0 0
    %539 = vmatprep.subr.bf16.mxu0 0
    %540 = vmatpush1.bf16.msra.mxu0 0
    %541 = vmatprep.subr.bf16.mxu0 0
    %542 = vmatpush1.bf16.msra.mxu0 0
    %543 = vmatprep.mubr.bf16.mxu0 0
    %544 = vmatmul.mubr.bf16.gmra.mrb[0].mxu0 %v506
    %v545 = vpop.f32.mrb[0].mxu0
    %v546 = vadd.f32 0.0, %v545
    %v547 = vpop.f32.mrb[0].mxu0
    %v548 = vpop.f32.mrb[0].mxu0
    %v549 = vadd.f32 0.0, %v548
    %v550 = vpop.f32.mrb[0].mxu0
    %551 = vmatprep.mubr.bf16.mxu0 0
    %552 = vmatmul.mubr.bf16.gmra.mrb[0].mxu0 %v509
    %v553 = vpop.f32.mrb[0].mxu0
    %v554 = vadd.f32 0.0, %v553
    %v555 = vpop.f32.mrb[0].mxu0
    %v556 = vpop.f32.mrb[0].mxu0
    %v557 = vadd.f32 0.0, %v556
    %v558 = vpop.f32.mrb[0].mxu0
    %559 = vdwg.mxu0
    %v561 = vsel %vm84, %v485, 0
    %v564 = vsel %vm84, %v486, 0
    %566 = vmatprep.subr.bf16.mxu0 0
    %567 = vmatpush1.bf16.msra.mxu0 %v503
    %568 = vmatprep.subr.bf16.mxu0 0
    %569 = vmatpush1.bf16.msra.mxu0 0
    %570 = vmatprep.subr.bf16.mxu0 0
    %571 = vmatpush1.bf16.msra.mxu0 0
    %572 = vmatprep.subr.bf16.mxu0 0
    %573 = vmatpush1.bf16.msra.mxu0 0
    %574 = vmatprep.subr.bf16.mxu0 0
    %575 = vmatpush1.bf16.msra.mxu0 0
    %576 = vmatprep.subr.bf16.mxu0 0
    %577 = vmatpush1.bf16.msra.mxu0 0
    %578 = vmatprep.subr.bf16.mxu0 0
    %579 = vmatpush1.bf16.msra.mxu0 0
    %580 = vmatprep.subr.bf16.mxu0 0
    %581 = vmatpush1.bf16.msra.mxu0 0
    %582 = vmatprep.subr.bf16.mxu0 0
    %583 = vmatpush1.bf16.msra.mxu0 0
    %584 = vmatprep.subr.bf16.mxu0 0
    %585 = vmatpush1.bf16.msra.mxu0 0
    %586 = vmatprep.subr.bf16.mxu0 0
    %587 = vmatpush1.bf16.msra.mxu0 0
    %588 = vmatprep.subr.bf16.mxu0 0
    %589 = vmatpush1.bf16.msra.mxu0 0
    %590 = vmatprep.subr.bf16.mxu0 0
    %591 = vmatpush1.bf16.msra.mxu0 0
    %592 = vmatprep.subr.bf16.mxu0 0
    %593 = vmatpush1.bf16.msra.mxu0 0
    %594 = vmatprep.subr.bf16.mxu0 0
    %595 = vmatpush1.bf16.msra.mxu0 0
    %596 = vmatprep.subr.bf16.mxu0 0
    %597 = vmatpush1.bf16.msra.mxu0 0
    %598 = vmatprep.mubr.bf16.mxu0 0
    %599 = vmatmul.mubr.bf16.gmra.mrb[0].mxu0 %v561
    %v600 = vpop.f32.mrb[0].mxu0
    %v601 = vadd.f32 0.0, %v600
    %v602 = vpop.f32.mrb[0].mxu0
    %v603 = vpop.f32.mrb[0].mxu0
    %v604 = vadd.f32 0.0, %v603
    %v605 = vpop.f32.mrb[0].mxu0
    %606 = vmatprep.mubr.bf16.mxu0 0
    %607 = vmatmul.mubr.bf16.gmra.mrb[0].mxu0 %v564
    %v608 = vpop.f32.mrb[0].mxu0
    %v609 = vadd.f32 0.0, %v608
    %v610 = vpop.f32.mrb[0].mxu0
    %v611 = vpop.f32.mrb[0].mxu0
    %v612 = vadd.f32 0.0, %v611
    %v613 = vpop.f32.mrb[0].mxu0
    %614 = vdwg.mxu0
    %v616 = vsel %vm84, %v487, 0
    %v619 = vsel %vm84, %v488, 0
    %621 = vmatprep.subr.bf16.mxu0 0
    %622 = vmatpush1.bf16.msra.mxu0 %v503
    %623 = vmatprep.subr.bf16.mxu0 0
    %624 = vmatpush1.bf16.msra.mxu0 0
    %625 = vmatprep.subr.bf16.mxu0 0
    %626 = vmatpush1.bf16.msra.mxu0 0
    %627 = vmatprep.subr.bf16.mxu0 0
    %628 = vmatpush1.bf16.msra.mxu0 0
    %629 = vmatprep.subr.bf16.mxu0 0
    %630 = vmatpush1.bf16.msra.mxu0 0
    %631 = vmatprep.subr.bf16.mxu0 0
    %632 = vmatpush1.bf16.msra.mxu0 0
    %633 = vmatprep.subr.bf16.mxu0 0
    %634 = vmatpush1.bf16.msra.mxu0 0
    %635 = vmatprep.subr.bf16.mxu0 0
    %636 = vmatpush1.bf16.msra.mxu0 0
    %637 = vmatprep.subr.bf16.mxu0 0
    %638 = vmatpush1.bf16.msra.mxu0 0
    %639 = vmatprep.subr.bf16.mxu0 0
    %640 = vmatpush1.bf16.msra.mxu0 0
    %641 = vmatprep.subr.bf16.mxu0 0
    %642 = vmatpush1.bf16.msra.mxu0 0
    %643 = vmatprep.subr.bf16.mxu0 0
    %644 = vmatpush1.bf16.msra.mxu0 0
    %645 = vmatprep.subr.bf16.mxu0 0
    %646 = vmatpush1.bf16.msra.mxu0 0
    %647 = vmatprep.subr.bf16.mxu0 0
    %648 = vmatpush1.bf16.msra.mxu0 0
    %649 = vmatprep.subr.bf16.mxu0 0
    %650 = vmatpush1.bf16.msra.mxu0 0
    %651 = vmatprep.subr.bf16.mxu0 0
    %652 = vmatpush1.bf16.msra.mxu0 0
    %653 = vmatprep.mubr.bf16.mxu0 0
    %654 = vmatmul.mubr.bf16.gmra.mrb[0].mxu0 %v616
    %v655 = vpop.f32.mrb[0].mxu0
    %v656 = vadd.f32 0.0, %v655
    %v657 = vpop.f32.mrb[0].mxu0
    %v658 = vpop.f32.mrb[0].mxu0
    %v659 = vadd.f32 0.0, %v658
    %v660 = vpop.f32.mrb[0].mxu0
    %661 = vmatprep.mubr.bf16.mxu0 0
    %662 = vmatmul.mubr.bf16.gmra.mrb[0].mxu0 %v619
    %v663 = vpop.f32.mrb[0].mxu0
    %v664 = vadd.f32 0.0, %v663
    %v665 = vpop.f32.mrb[0].mxu0
    %v666 = vpop.f32.mrb[0].mxu0
    %v667 = vadd.f32 0.0, %v666
    %v668 = vpop.f32.mrb[0].mxu0
    %669 = vdwg.mxu0
    %v671 = vsel %vm84, %v489, 0
    %v674 = vsel %vm84, %v490, 0
    %676 = vmatprep.subr.bf16.mxu0 0
    %677 = vmatpush1.bf16.msra.mxu0 %v503
    %678 = vmatprep.subr.bf16.mxu0 0
    %679 = vmatpush1.bf16.msra.mxu0 0
    %680 = vmatprep.subr.bf16.mxu0 0
    %681 = vmatpush1.bf16.msra.mxu0 0
    %682 = vmatprep.subr.bf16.mxu0 0
    %683 = vmatpush1.bf16.msra.mxu0 0
    %684 = vmatprep.subr.bf16.mxu0 0
    %685 = vmatpush1.bf16.msra.mxu0 0
    %686 = vmatprep.subr.bf16.mxu0 0
    %687 = vmatpush1.bf16.msra.mxu0 0
    %688 = vmatprep.subr.bf16.mxu0 0
    %689 = vmatpush1.bf16.msra.mxu0 0
    %690 = vmatprep.subr.bf16.mxu0 0
    %691 = vmatpush1.bf16.msra.mxu0 0
    %692 = vmatprep.subr.bf16.mxu0 0
    %693 = vmatpush1.bf16.msra.mxu0 0
    %694 = vmatprep.subr.bf16.mxu0 0
    %695 = vmatpush1.bf16.msra.mxu0 0
    %696 = vmatprep.subr.bf16.mxu0 0
    %697 = vmatpush1.bf16.msra.mxu0 0
    %698 = vmatprep.subr.bf16.mxu0 0
    %699 = vmatpush1.bf16.msra.mxu0 0
    %700 = vmatprep.subr.bf16.mxu0 0
    %701 = vmatpush1.bf16.msra.mxu0 0
    %702 = vmatprep.subr.bf16.mxu0 0
    %703 = vmatpush1.bf16.msra.mxu0 0
    %704 = vmatprep.subr.bf16.mxu0 0
    %705 = vmatpush1.bf16.msra.mxu0 0
    %706 = vmatprep.subr.bf16.mxu0 0
    %707 = vmatpush1.bf16.msra.mxu0 0
    %708 = vmatprep.mubr.bf16.mxu0 0
    %709 = vmatmul.mubr.bf16.gmra.mrb[0].mxu0 %v671
    %v710 = vpop.f32.mrb[0].mxu0
    %v711 = vadd.f32 0.0, %v710
    %v712 = vpop.f32.mrb[0].mxu0
    %v713 = vpop.f32.mrb[0].mxu0
    %v714 = vadd.f32 0.0, %v713
    %v715 = vpop.f32.mrb[0].mxu0
    %716 = vmatprep.mubr.bf16.mxu0 0
    %717 = vmatmul.mubr.bf16.gmra.mrb[0].mxu0 %v674
    %v718 = vpop.f32.mrb[0].mxu0
    %v719 = vadd.f32 0.0, %v718
    %v720 = vpop.f32.mrb[0].mxu0
    %v721 = vpop.f32.mrb[0].mxu0
    %v722 = vadd.f32 0.0, %v721
    %v723 = vpop.f32.mrb[0].mxu0
    %724 = vdwg.mxu0
    %v726 = vsel %vm84, %v491, 0
    %v729 = vsel %vm84, %v492, 0
    %731 = vmatprep.subr.bf16.mxu0 0
    %732 = vmatpush1.bf16.msra.mxu0 %v503
    %733 = vmatprep.subr.bf16.mxu0 0
    %734 = vmatpush1.bf16.msra.mxu0 0
    %735 = vmatprep.subr.bf16.mxu0 0
    %736 = vmatpush1.bf16.msra.mxu0 0
    %737 = vmatprep.subr.bf16.mxu0 0
    %738 = vmatpush1.bf16.msra.mxu0 0
    %739 = vmatprep.subr.bf16.mxu0 0
    %740 = vmatpush1.bf16.msra.mxu0 0
    %741 = vmatprep.subr.bf16.mxu0 0
    %742 = vmatpush1.bf16.msra.mxu0 0
    %743 = vmatprep.subr.bf16.mxu0 0
    %744 = vmatpush1.bf16.msra.mxu0 0
    %745 = vmatprep.subr.bf16.mxu0 0
    %746 = vmatpush1.bf16.msra.mxu0 0
    %747 = vmatprep.subr.bf16.mxu0 0
    %748 = vmatpush1.bf16.msra.mxu0 0
    %749 = vmatprep.subr.bf16.mxu0 0
    %750 = vmatpush1.bf16.msra.mxu0 0
    %751 = vmatprep.subr.bf16.mxu0 0
    %752 = vmatpush1.bf16.msra.mxu0 0
    %753 = vmatprep.subr.bf16.mxu0 0
    %754 = vmatpush1.bf16.msra.mxu0 0
    %755 = vmatprep.subr.bf16.mxu0 0
    %756 = vmatpush1.bf16.msra.mxu0 0
    %757 = vmatprep.subr.bf16.mxu0 0
    %758 = vmatpush1.bf16.msra.mxu0 0
    %759 = vmatprep.subr.bf16.mxu0 0
    %760 = vmatpush1.bf16.msra.mxu0 0
    %761 = vmatprep.subr.bf16.mxu0 0
    %762 = vmatpush1.bf16.msra.mxu0 0
    %763 = vmatprep.mubr.bf16.mxu0 0
    %764 = vmatmul.mubr.bf16.gmra.mrb[0].mxu0 %v726
    %v765 = vpop.f32.mrb[0].mxu0
    %v766 = vadd.f32 0.0, %v765
    %v767 = vpop.f32.mrb[0].mxu0
    %v768 = vpop.f32.mrb[0].mxu0
    %v769 = vadd.f32 0.0, %v768
    %v770 = vpop.f32.mrb[0].mxu0
    %771 = vmatprep.mubr.bf16.mxu0 0
    %772 = vmatmul.mubr.bf16.gmra.mrb[0].mxu0 %v729
    %v773 = vpop.f32.mrb[0].mxu0
    %v774 = vadd.f32 0.0, %v773
    %v775 = vpop.f32.mrb[0].mxu0
    %v776 = vpop.f32.mrb[0].mxu0
    %v777 = vadd.f32 0.0, %v776
    %v778 = vpop.f32.mrb[0].mxu0
    %779 = vdwg.mxu0
    %v781 = vsel %vm84, %v493, 0
    %v784 = vsel %vm84, %v494, 0
    %786 = vmatprep.subr.bf16.mxu0 0
    %787 = vmatpush1.bf16.msra.mxu0 %v503
    %788 = vmatprep.subr.bf16.mxu0 0
    %789 = vmatpush1.bf16.msra.mxu0 0
    %790 = vmatprep.subr.bf16.mxu0 0
    %791 = vmatpush1.bf16.msra.mxu0 0
    %792 = vmatprep.subr.bf16.mxu0 0
    %793 = vmatpush1.bf16.msra.mxu0 0
    %794 = vmatprep.subr.bf16.mxu0 0
    %795 = vmatpush1.bf16.msra.mxu0 0
    %796 = vmatprep.subr.bf16.mxu0 0
    %797 = vmatpush1.bf16.msra.mxu0 0
    %798 = vmatprep.subr.bf16.mxu0 0
    %799 = vmatpush1.bf16.msra.mxu0 0
    %800 = vmatprep.subr.bf16.mxu0 0
    %801 = vmatpush1.bf16.msra.mxu0 0
    %802 = vmatprep.subr.bf16.mxu0 0
    %803 = vmatpush1.bf16.msra.mxu0 0
    %804 = vmatprep.subr.bf16.mxu0 0
    %805 = vmatpush1.bf16.msra.mxu0 0
    %806 = vmatprep.subr.bf16.mxu0 0
    %807 = vmatpush1.bf16.msra.mxu0 0
    %808 = vmatprep.subr.bf16.mxu0 0
    %809 = vmatpush1.bf16.msra.mxu0 0
    %810 = vmatprep.subr.bf16.mxu0 0
    %811 = vmatpush1.bf16.msra.mxu0 0
    %812 = vmatprep.subr.bf16.mxu0 0
    %813 = vmatpush1.bf16.msra.mxu0 0
    %814 = vmatprep.subr.bf16.mxu0 0
    %815 = vmatpush1.bf16.msra.mxu0 0
    %816 = vmatprep.subr.bf16.mxu0 0
    %817 = vmatpush1.bf16.msra.mxu0 0
    %818 = vmatprep.mubr.bf16.mxu0 0
    %819 = vmatmul.mubr.bf16.gmra.mrb[0].mxu0 %v781
    %v820 = vpop.f32.mrb[0].mxu0
    %v821 = vadd.f32 0.0, %v820
    %v822 = vpop.f32.mrb[0].mxu0
    %v823 = vpop.f32.mrb[0].mxu0
    %v824 = vadd.f32 0.0, %v823
    %v825 = vpop.f32.mrb[0].mxu0
    %826 = vmatprep.mubr.bf16.mxu0 0
    %827 = vmatmul.mubr.bf16.gmra.mrb[0].mxu0 %v784
    %v828 = vpop.f32.mrb[0].mxu0
    %v829 = vadd.f32 0.0, %v828
    %v830 = vpop.f32.mrb[0].mxu0
    %v831 = vpop.f32.mrb[0].mxu0
    %v832 = vadd.f32 0.0, %v831
    %v833 = vpop.f32.mrb[0].mxu0
    %834 = vdwg.mxu0
    %v836 = vsel %vm84, %v495, 0
    %v839 = vsel %vm84, %v496, 0
    %841 = vmatprep.subr.bf16.mxu0 0
    %842 = vmatpush1.bf16.msra.mxu0 %v503
    %843 = vmatprep.subr.bf16.mxu0 0
    %844 = vmatpush1.bf16.msra.mxu0 0
    %845 = vmatprep.subr.bf16.mxu0 0
    %846 = vmatpush1.bf16.msra.mxu0 0
    %847 = vmatprep.subr.bf16.mxu0 0
    %848 = vmatpush1.bf16.msra.mxu0 0
    %849 = vmatprep.subr.bf16.mxu0 0
    %850 = vmatpush1.bf16.msra.mxu0 0
    %851 = vmatprep.subr.bf16.mxu0 0
    %852 = vmatpush1.bf16.msra.mxu0 0
    %853 = vmatprep.subr.bf16.mxu0 0
    %854 = vmatpush1.bf16.msra.mxu0 0
    %855 = vmatprep.subr.bf16.mxu0 0
    %856 = vmatpush1.bf16.msra.mxu0 0
    %857 = vmatprep.subr.bf16.mxu0 0
    %858 = vmatpush1.bf16.msra.mxu0 0
    %859 = vmatprep.subr.bf16.mxu0 0
    %860 = vmatpush1.bf16.msra.mxu0 0
    %861 = vmatprep.subr.bf16.mxu0 0
    %862 = vmatpush1.bf16.msra.mxu0 0
    %863 = vmatprep.subr.bf16.mxu0 0
    %864 = vmatpush1.bf16.msra.mxu0 0
    %865 = vmatprep.subr.bf16.mxu0 0
    %866 = vmatpush1.bf16.msra.mxu0 0
    %867 = vmatprep.subr.bf16.mxu0 0
    %868 = vmatpush1.bf16.msra.mxu0 0
    %869 = vmatprep.subr.bf16.mxu0 0
    %870 = vmatpush1.bf16.msra.mxu0 0
    %871 = vmatprep.subr.bf16.mxu0 0
    %872 = vmatpush1.bf16.msra.mxu0 0
    %873 = vmatprep.mubr.bf16.mxu0 0
    %874 = vmatmul.mubr.bf16.gmra.mrb[0].mxu0 %v836
    %v875 = vpop.f32.mrb[0].mxu0
    %v876 = vadd.f32 0.0, %v875
    %v877 = vpop.f32.mrb[0].mxu0
    %v878 = vpop.f32.mrb[0].mxu0
    %v879 = vadd.f32 0.0, %v878
    %v880 = vpop.f32.mrb[0].mxu0
    %881 = vmatprep.mubr.bf16.mxu0 0
    %882 = vmatmul.mubr.bf16.gmra.mrb[0].mxu0 %v839
    %v883 = vpop.f32.mrb[0].mxu0
    %v884 = vadd.f32 0.0, %v883
    %v885 = vpop.f32.mrb[0].mxu0
    %v886 = vpop.f32.mrb[0].mxu0
    %v887 = vadd.f32 0.0, %v886
    %v888 = vpop.f32.mrb[0].mxu0
    %889 = vdwg.mxu0
    %v891 = vsel %vm84, %v497, 0
    %v894 = vsel %vm84, %v498, 0
    %896 = vmatprep.subr.bf16.mxu0 0
    %897 = vmatpush1.bf16.msra.mxu0 %v503
    %898 = vmatprep.subr.bf16.mxu0 0
    %899 = vmatpush1.bf16.msra.mxu0 0
    %900 = vmatprep.subr.bf16.mxu0 0
    %901 = vmatpush1.bf16.msra.mxu0 0
    %902 = vmatprep.subr.bf16.mxu0 0
    %903 = vmatpush1.bf16.msra.mxu0 0
    %904 = vmatprep.subr.bf16.mxu0 0
    %905 = vmatpush1.bf16.msra.mxu0 0
    %906 = vmatprep.subr.bf16.mxu0 0
    %907 = vmatpush1.bf16.msra.mxu0 0
    %908 = vmatprep.subr.bf16.mxu0 0
    %909 = vmatpush1.bf16.msra.mxu0 0
    %910 = vmatprep.subr.bf16.mxu0 0
    %911 = vmatpush1.bf16.msra.mxu0 0
    %912 = vmatprep.subr.bf16.mxu0 0
    %913 = vmatpush1.bf16.msra.mxu0 0
    %914 = vmatprep.subr.bf16.mxu0 0
    %915 = vmatpush1.bf16.msra.mxu0 0
    %916 = vmatprep.subr.bf16.mxu0 0
    %917 = vmatpush1.bf16.msra.mxu0 0
    %918 = vmatprep.subr.bf16.mxu0 0
    %919 = vmatpush1.bf16.msra.mxu0 0
    %920 = vmatprep.subr.bf16.mxu0 0
    %921 = vmatpush1.bf16.msra.mxu0 0
    %922 = vmatprep.subr.bf16.mxu0 0
    %923 = vmatpush1.bf16.msra.mxu0 0
    %924 = vmatprep.subr.bf16.mxu0 0
    %925 = vmatpush1.bf16.msra.mxu0 0
    %926 = vmatprep.subr.bf16.mxu0 0
    %927 = vmatpush1.bf16.msra.mxu0 0
    %928 = vmatprep.mubr.bf16.mxu0 0
    %929 = vmatmul.mubr.bf16.gmra.mrb[0].mxu0 %v891
    %v930 = vpop.f32.mrb[0].mxu0
    %v931 = vadd.f32 0.0, %v930
    %v932 = vpop.f32.mrb[0].mxu0
    %v933 = vpop.f32.mrb[0].mxu0
    %v934 = vadd.f32 0.0, %v933
    %v935 = vpop.f32.mrb[0].mxu0
    %936 = vmatprep.mubr.bf16.mxu0 0
    %937 = vmatmul.mubr.bf16.gmra.mrb[0].mxu0 %v894
    %v938 = vpop.f32.mrb[0].mxu0
    %v939 = vadd.f32 0.0, %v938
    %v940 = vpop.f32.mrb[0].mxu0
    %v941 = vpop.f32.mrb[0].mxu0
    %v942 = vadd.f32 0.0, %v941
    %v943 = vpop.f32.mrb[0].mxu0
    %944 = vdwg.mxu0
    %vm945 = vcmask 261120
    %946 = vst.msk [vmem:[#allocation7] sm:$0xff] %vm945, %v546
    %947 = vst.msk [vmem:[#allocation7 + $0x8] sm:$0xff] %vm945, %v549
    %948 = vst.msk [vmem:[#allocation7 + $0x10] sm:$0xff] %vm945, %v554
    %949 = vst.msk [vmem:[#allocation7 + $0x18] sm:$0xff] %vm945, %v557
    %950 = vst.msk [vmem:[#allocation7 + $0x20] sm:$0xff] %vm945, %v601
    %951 = vst.msk [vmem:[#allocation7 + $0x28] sm:$0xff] %vm945, %v604
    %952 = vst.msk [vmem:[#allocation7 + $0x30] sm:$0xff] %vm945, %v609
    %953 = vst.msk [vmem:[#allocation7 + $0x38] sm:$0xff] %vm945, %v612
    %954 = vst.msk [vmem:[#allocation7 + $0x40] sm:$0xff] %vm945, %v656
    %955 = vst.msk [vmem:[#allocation7 + $0x48] sm:$0xff] %vm945, %v659
    %956 = vst.msk [vmem:[#allocation7 + $0x50] sm:$0xff] %vm945, %v664
    %957 = vst.msk [vmem:[#allocation7 + $0x58] sm:$0xff] %vm945, %v667
    %958 = vst.msk [vmem:[#allocation7 + $0x60] sm:$0xff] %vm945, %v711
    %959 = vst.msk [vmem:[#allocation7 + $0x68] sm:$0xff] %vm945, %v714
    %960 = vst.msk [vmem:[#allocation7 + $0x70] sm:$0xff] %vm945, %v719
    %961 = vst.msk [vmem:[#allocation7 + $0x78] sm:$0xff] %vm945, %v722
    %962 = vst.msk [vmem:[#allocation7 + $0x80] sm:$0xff] %vm945, %v766
    %963 = vst.msk [vmem:[#allocation7 + $0x88] sm:$0xff] %vm945, %v769
    %964 = vst.msk [vmem:[#allocation7 + $0x90] sm:$0xff] %vm945, %v774
    %965 = vst.msk [vmem:[#allocation7 + $0x98] sm:$0xff] %vm945, %v777
    %966 = vst.msk [vmem:[#allocation7 + $0xa0] sm:$0xff] %vm945, %v821
    %967 = vst.msk [vmem:[#allocation7 + $0xa8] sm:$0xff] %vm945, %v824
    %968 = vst.msk [vmem:[#allocation7 + $0xb0] sm:$0xff] %vm945, %v829
    %969 = vst.msk [vmem:[#allocation7 + $0xb8] sm:$0xff] %vm945, %v832
    %970 = vst.msk [vmem:[#allocation7 + $0xc0] sm:$0xff] %vm945, %v876
    %971 = vst.msk [vmem:[#allocation7 + $0xc8] sm:$0xff] %vm945, %v879
    %972 = vst.msk [vmem:[#allocation7 + $0xd0] sm:$0xff] %vm945, %v884
    %973 = vst.msk [vmem:[#allocation7 + $0xd8] sm:$0xff] %vm945, %v887
    %974 = vst.msk [vmem:[#allocation7 + $0xe0] sm:$0xff] %vm945, %v931
    %975 = vst.msk [vmem:[#allocation7 + $0xe8] sm:$0xff] %vm945, %v934
    %976 = vst.msk [vmem:[#allocation7 + $0xf0] sm:$0xff] %vm945, %v939
    %977 = vst.msk [vmem:[#allocation7 + $0xf8] sm:$0xff] %vm945, %v942
    // Predicated region
    $region22: #{bilinear_up2x_pallas.1} parent=1 // pred_check
      _
    $region23: #{bilinear_up2x_pallas.1} parent=1 // pred_check_branch
      %979 = sbr.rel (0) target = $region25
    $region24: #{bilinear_up2x_pallas.1} parent=1 // pred_region
      %s981 = ssub.s32 4096, 4096
      %982 = vsyncadd [#allocation4], %s981
      %s983 = sshll.u32 [#allocation7], 4
      %s984 = int_to_ptr.vmem [resolvable:$true] %s983
      %989 = dma.vmem_to_hbm [thread:$0]  %s984, 4096, %s3, [#allocation4], 128, 128, 8
    $region25: #{bilinear_up2x_pallas.1} parent=1 // pred_fallthru
      _
    // Predicated region
    $region26: #{bilinear_up2x_pallas.1} parent=1 // pred_check
      _
    $region27: #{bilinear_up2x_pallas.1} parent=1 // pred_check_branch
      %991 = sbr.rel (0) target = $region29
    $region28: #{bilinear_up2x_pallas.1} parent=1 // pred_region
      %992 = dma.done [#allocation4], 4096
    $region29: #{bilinear_up2x_pallas.1} parent=1 // pred_fallthru
      _
    %993 = vsyncpa [#allocation3], 1
    %994 = vsyncpa [#allocation6], 1
    %995 = vsyncpa [#allocation4], 1

</llo_original>
